<compile_context>
chip_gen: v6e
topology: v6e:2x2x1
jax: 0.10.0
libtpu: 0.0.40
codegen_flags: <defaults>
</compile_context>

<pallas_src>
import functools
import math

import jax
import jax.numpy as jnp
from jax import lax
from jax.experimental import pallas as pl
from jax.experimental.pallas import tpu as pltpu


def _round_up(x, m):
    return ((x + m - 1) // m) * m


_INV_SQRT2 = 1.0 / math.sqrt(2.0)


def _gelu(h, approximate):
    if approximate:
        # tanh/exp lower to the EUP slot (free under MXU cover); numerics differ
        # slightly from torch.nn.GELU()'s exact erf default, so this is opt-in.
        return jax.nn.gelu(h, approximate=True)
    return 0.5 * h * (1.0 + lax.erf(h * _INV_SQRT2))


# ---------------------------------------------------------------------------
# Kernels. Grid = (row_tiles, hidden_chunks); hidden (reduction) axis innermost.
# ---------------------------------------------------------------------------

def _ffn_kernel_acc(x_ref, w1_ref, b1_ref, w2_ref, b2_ref, o_ref, acc_ref, *,
                    approximate):
    """out = gelu(x @ W1 + b1) @ W2 + b2, f32 accumulation in a VMEM scratch.

    Used when the output dtype is not f32 (e.g. bf16): partial sums stay in full
    precision until the final cast.
    """
    k = pl.program_id(1)

    @pl.when(k == 0)
    def _():
        acc_ref[...] = jnp.zeros_like(acc_ref)

    h = jnp.dot(x_ref[...], w1_ref[...], preferred_element_type=jnp.float32)
    h = h + b1_ref[...]              # (1, hidden_tile) broadcasts over rows
    h = _gelu(h, approximate)
    # TODO(synk): training-mode dropout (pltpu.prng_seed + prng_random_bits mask,
    # gated on a scalar-prefetch flag) omitted; eval-mode dropout is the identity.
    acc_ref[...] += jnp.dot(h.astype(w2_ref.dtype), w2_ref[...],
                            preferred_element_type=jnp.float32)

    @pl.when(k == pl.num_programs(1) - 1)
    def _():
        o_ref[...] = (acc_ref[...] + b2_ref[...]).astype(o_ref.dtype)


def _ffn_kernel_f32_out(x_ref, w1_ref, b1_ref, w2_ref, b2_ref, o_ref, *,
                        approximate):
    """Same as above, but the f32 output block itself is the accumulator.

    The output BlockSpec returns the same block index for every k, so the block
    stays resident in VMEM across the reduction; this removes the always-live
    row_tile x dim_p x 4B scratch (matters on v7x's 64 MiB VMEM) and one extra
    accumulator read/write on the final k step.
    """
    k = pl.program_id(1)

    @pl.when(k == 0)
    def _():
        o_ref[...] = jnp.zeros_like(o_ref)

    h = jnp.dot(x_ref[...], w1_ref[...], preferred_element_type=jnp.float32)
    h = h + b1_ref[...]
    h = _gelu(h, approximate)
    o_ref[...] += jnp.dot(h.astype(w2_ref.dtype), w2_ref[...],
                          preferred_element_type=jnp.float32)

    @pl.when(k == pl.num_programs(1) - 1)
    def _():
        o_ref[...] = o_ref[...] + b2_ref[...]


# ---------------------------------------------------------------------------
# Per-generation defaults and tile sizing.
# ---------------------------------------------------------------------------

def _chip_config():
    """Roofline-driven per-TPU-generation tile / VMEM defaults."""
    kind = ""
    try:
        kind = (jax.devices()[0].device_kind or "").lower()
    except Exception:
        pass
    vmem_cap = None
    try:
        vmem_cap = int(pltpu.get_tpu_info().vmem_capacity_bytes)
    except Exception:
        pass

    # Conservative fallback (works on any generation).
    cfg = dict(row_tile=512, hidden_tile=512, feat_align=128,
               vmem_limit=64 * 1024 * 1024, split_single_row_tile=False)

    is_v7 = ("7x" in kind) or ("v7" in kind) or (
        vmem_cap is not None and vmem_cap <= 80 * 1024 * 1024)
    is_v6 = "v6" in kind
    is_v5e = ("v5 lite" in kind) or ("v5e" in kind) or ("v5litepod" in kind)

    if is_v7:
        # 64 MiB VMEM / 2 TensorCores: moderate tiles, ~48 MiB scoped limit,
        # and ensure >=2 row tiles so the parallel axis shards across cores.
        cfg.update(row_tile=512, hidden_tile=512, feat_align=256,
                   vmem_limit=48 * 1024 * 1024, split_single_row_tile=True)
    elif is_v6:
        # 128 MiB VMEM, crossover ~680 FLOPs/byte: big row tiles amortise the
        # per-row-tile weight stream; hidden_tile=1024 halves k steps.
        cfg.update(row_tile=1024, hidden_tile=1024, feat_align=256,
                   vmem_limit=104 * 1024 * 1024)
    elif is_v5e:
        # 128 MiB VMEM, crossover ~240 FLOPs/byte, 4x128^2 MXU -> 128 alignment.
        # (Optionally pipeline_mode=pl.Buffered(3) on the weight specs would
        # deepen the weight pipeline; not enabled here.)
        cfg.update(row_tile=512, hidden_tile=512, feat_align=128,
                   vmem_limit=96 * 1024 * 1024)

    if vmem_cap is not None:
        cfg["vmem_limit"] = min(cfg["vmem_limit"], int(vmem_cap * 0.75))
    return cfg


def _aligned_divisors(total, align):
    return [t for t in range(align, total + 1, align) if total % t == 0]


def _fit_tiles(row_tile, hidden_tile_target, n, dim_p, hidden_p, x_bytes,
               w_bytes, out_bytes, use_acc, vmem_limit, split_single_row_tile):
    # hidden_tile: largest 128-aligned divisor of hidden_p not above the target.
    ht_cands = _aligned_divisors(hidden_p, 128)
    hidden_tile = max([t for t in ht_cands if t <= max(hidden_tile_target, 128)],
                      default=ht_cands[0])

    # Clamp the row tile to the (8-rounded) problem size.
    n_p8 = _round_up(max(n, 1), 8)
    row_tile = _round_up(min(row_tile, n_p8), 8)
    # v7x megacore: make sure the 'parallel' row axis has >= 2 tiles to shard.
    if (split_single_row_tile and n_p8 > 8
            and _round_up(n_p8, row_tile) // row_tile < 2):
        row_tile = _round_up((n_p8 + 1) // 2, 8)

    def usage(rt, ht):
        u = 2 * rt * dim_p * x_bytes            # x (double-buffered)
        u += 2 * dim_p * ht * w_bytes           # w1 chunk
        u += 2 * ht * dim_p * w_bytes           # w2 chunk
        u += 2 * (ht + dim_p) * w_bytes         # biases
        u += 2 * rt * dim_p * out_bytes         # output block
        if use_acc:
            u += rt * dim_p * 4                 # f32 accumulator (single-buffered)
        return u

    budget = int(vmem_limit * 0.85)             # headroom for compiler scratch
    # Shrink hidden_tile first (only per-step overhead), then row_tile (costs
    # weight-stream arithmetic intensity).
    while usage(row_tile, hidden_tile) > budget:
        smaller_ht = [t for t in ht_cands if t < hidden_tile]
        if hidden_tile > 256 and smaller_ht:
            hidden_tile = smaller_ht[-1]
        elif row_tile > 64:
            row_tile = _round_up(row_tile // 2, 8)
        elif smaller_ht:
            hidden_tile = smaller_ht[-1]
        elif row_tile > 8:
            row_tile = _round_up(row_tile // 2, 8)
        else:
            break

    n_p = _round_up(max(n, 1), row_tile)
    return row_tile, hidden_tile, n_p


# ---------------------------------------------------------------------------
# Public API.
# ---------------------------------------------------------------------------

def prepare_ffn_params(w1, b1, w2, b2, *, feat_align=None):
    """Pad weights/biases to lane-aligned shapes ONCE, outside the per-call hot
    path (per-call weight padding was a serial HBM->HBM copy in front of the
    kernel). Zero padding is numerically exact."""
    if feat_align is None:
        feat_align = _chip_config()["feat_align"]
    dim, hidden = w1.shape
    assert w2.shape == (hidden, dim)
    dim_p = _round_up(dim, feat_align)
    hidden_p = _round_up(hidden, feat_align)
    return dict(
        w1=jnp.pad(w1, ((0, dim_p - dim), (0, hidden_p - hidden))),
        b1=jnp.pad(b1, (0, hidden_p - hidden)).reshape(1, hidden_p),
        w2=jnp.pad(w2, ((0, hidden_p - hidden), (0, dim_p - dim))),
        b2=jnp.pad(b2, (0, dim_p - dim)).reshape(1, dim_p),
    )


def feed_forward(x, params, *, row_tile=None, hidden_tile=None,
                 vmem_limit_bytes=None, approximate_gelu=False):
    """Fused FFN: gelu(x @ W1 + b1) @ W2 + b2 (dropout is an eval-mode no-op).

    x: [..., dim]; params: from prepare_ffn_params (pre-padded weights).
    """
    cfg = _chip_config()
    if row_tile is None:
        row_tile = cfg["row_tile"]
    if hidden_tile is None:
        hidden_tile = cfg["hidden_tile"]
    if vmem_limit_bytes is None:
        vmem_limit_bytes = cfg["vmem_limit"]

    w1p, b1p, w2p, b2p = params["w1"], params["b1"], params["w2"], params["b2"]
    dim_p, hidden_p = w1p.shape

    orig_shape = x.shape
    dim = orig_shape[-1]
    assert dim <= dim_p, "x feature dim larger than prepared weights"
    x2 = x.reshape(-1, dim)
    n = x2.shape[0]
    out_dtype = x.dtype
    use_acc = jnp.dtype(out_dtype) != jnp.dtype(jnp.float32)

    x_bytes = jnp.dtype(x.dtype).itemsize
    w_bytes = jnp.dtype(w1p.dtype).itemsize
    out_bytes = jnp.dtype(out_dtype).itemsize
    row_tile, hidden_tile, n_p = _fit_tiles(
        row_tile, hidden_tile, n, dim_p, hidden_p, x_bytes, w_bytes, out_bytes,
        use_acc, vmem_limit_bytes, cfg["split_single_row_tile"])

    # Per-call padding touches only the activations (weights were pre-padded).
    xp = jnp.pad(x2, ((0, n_p - n), (0, dim_p - dim)))

    grid = (n_p // row_tile, hidden_p // hidden_tile)  # reduction axis innermost
    n_row_tiles = grid[0]

    nbytes = lambda a: a.size * a.dtype.itemsize
    # Weights are re-streamed once per row tile; count that traffic honestly.
    cost = pl.CostEstimate(
        flops=4 * n_p * dim_p * hidden_p,               # two matmuls @ 2*M*K*N
        transcendentals=n_p * hidden_p,                 # one erf/tanh per hidden act
        bytes_accessed=(nbytes(xp) + n_p * dim_p * out_bytes
                        + n_row_tiles * (nbytes(w1p) + nbytes(b1p)
                                         + nbytes(w2p) + nbytes(b2p))),
    )

    kernel = functools.partial(
        _ffn_kernel_acc if use_acc else _ffn_kernel_f32_out,
        approximate=approximate_gelu)
    scratch_shapes = ([pltpu.VMEM((row_tile, dim_p), jnp.float32)]
                      if use_acc else [])

    # TODO(synk): for very large model widths (dim_p >~ 6-8K) add an output-dim
    # grid axis so the acc/out/w2 blocks stop scaling with dim_p; here VMEM is
    # bounded instead by shrinking tiles against the per-chip budget above.
    out_p = pl.pallas_call(
        kernel,
        out_shape=jax.ShapeDtypeStruct((n_p, dim_p), out_dtype),
        grid_spec=pltpu.PrefetchScalarGridSpec(
            num_scalar_prefetch=0,
            grid=grid,
            in_specs=[
                # activations: row-tiled, full (padded) feature dim
                pl.BlockSpec((row_tile, dim_p), lambda i, k: (i, 0)),
                # w1: column chunk of the hidden dim
                pl.BlockSpec((dim_p, hidden_tile), lambda i, k: (0, k)),
                # b1: matching hidden chunk
                pl.BlockSpec((1, hidden_tile), lambda i, k: (0, k)),
                # w2: row chunk of the hidden dim
                pl.BlockSpec((hidden_tile, dim_p), lambda i, k: (k, 0)),
                # b2: full (padded) output width
                pl.BlockSpec((1, dim_p), lambda i, k: (0, 0)),
            ],
            out_specs=pl.BlockSpec((row_tile, dim_p), lambda i, k: (i, 0)),
            scratch_shapes=scratch_shapes,
        ),
        compiler_params=pltpu.CompilerParams(
            dimension_semantics=("parallel", "arbitrary"),
            vmem_limit_bytes=vmem_limit_bytes,
        ),
        cost_estimate=cost,
    )(xp, w1p, b1p, w2p, b2p)

    return out_p[:n, :dim].reshape(orig_shape)


# ---------------------------------------------------------------------------
# Example / self-test.
# ---------------------------------------------------------------------------

def _init_params(key, dim, hidden_dim, dtype=jnp.float32):
    # Deterministic init mirroring nn.Linear's default U(-1/sqrt(fan_in), 1/sqrt(fan_in)).
    k1, k2, k3, k4 = jax.random.split(key, 4)
    bound1 = 1.0 / math.sqrt(dim)
    bound2 = 1.0 / math.sqrt(hidden_dim)
    w1 = jax.random.uniform(k1, (dim, hidden_dim), dtype, -bound1, bound1)
    b1 = jax.random.uniform(k2, (hidden_dim,), dtype, -bound1, bound1)
    w2 = jax.random.uniform(k3, (hidden_dim, dim), dtype, -bound2, bound2)
    b2 = jax.random.uniform(k4, (dim,), dtype, -bound2, bound2)
    return w1, b1, w2, b2


def _reference(x, w1, b1, w2, b2):
    h = jnp.dot(x, w1, preferred_element_type=jnp.float32) + b1
    h = 0.5 * h * (1.0 + lax.erf(h / jnp.sqrt(2.0)))
    return (jnp.dot(h, w2, preferred_element_type=jnp.float32) + b2).astype(x.dtype)


if __name__ == "__main__":
    key = jax.random.PRNGKey(0)
    kx, kp = jax.random.split(key)

    batch, seq, dim, hidden_dim = 2, 8, 32, 64
    x = jax.random.normal(kx, (batch, seq, dim), jnp.float32)
    w1, b1, w2, b2 = _init_params(kp, dim, hidden_dim)

    # Pad the weights ONCE (outside the per-call hot path).
    params = prepare_ffn_params(w1, b1, w2, b2)

    # f32 path (direct accumulation into the resident output block).
    out = jax.block_until_ready(feed_forward(x, params))
    ref = _reference(x.reshape(-1, dim), w1, b1, w2, b2).reshape(batch, seq, dim)
    assert out.shape == (batch, seq, dim)
    assert jnp.allclose(out, ref, atol=1e-4, rtol=1e-4), "mismatch vs reference"

    # bf16 path (f32 VMEM accumulator scratch) — smoke run.
    xb = x.astype(jnp.bfloat16)
    params_bf16 = prepare_ffn_params(
        *(a.astype(jnp.bfloat16) for a in (w1, b1, w2, b2)))
    out_bf16 = jax.block_until_ready(feed_forward(xb, params_bf16))
    assert out_bf16.shape == (batch, seq, dim)
    assert bool(jnp.all(jnp.isfinite(out_bf16.astype(jnp.float32))))

    # Optional tanh-approx GELU (EUP path) — smoke run with loose tolerance.
    out_tanh = jax.block_until_ready(feed_forward(x, params, approximate_gelu=True))
    assert jnp.allclose(out_tanh, ref, atol=5e-2, rtol=5e-2)

    print("KERNEL_OK")
</pallas_src>

<mosaic_0001>
module attributes {stable_mosaic.version = 11 : i64} {
  func.func @_ffn_kernel_f32_out(%arg0: i32, %arg1: i32, %arg2: memref<16x128xf32, #tpu.memory_space<vmem>>, %arg3: memref<128x128xf32, #tpu.memory_space<vmem>>, %arg4: memref<1x128xf32, #tpu.memory_space<vmem>>, %arg5: memref<128x128xf32, #tpu.memory_space<vmem>>, %arg6: memref<1x128xf32, #tpu.memory_space<vmem>>, %arg7: memref<16x128xf32, #tpu.memory_space<vmem>>) attributes {dimension_semantics = [#tpu.dimension_semantics<parallel>, #tpu.dimension_semantics<arbitrary>], iteration_bounds = array<i64: 1, 1>, scalar_prefetch = 0 : i64, scratch_operands = 0 : i64, tpu.core_type = #tpu.core_type<tc>, window_params = [{transform_indices = @transform_0, window_bounds = array<i64: 16, 128>}, {transform_indices = @transform_1, window_bounds = array<i64: 128, 128>}, {transform_indices = @transform_2, window_bounds = array<i64: 1, 128>}, {transform_indices = @transform_3, window_bounds = array<i64: 128, 128>}, {pipeline_mode = #tpu.pipeline_mode<synchronous>, transform_indices = @transform_4, window_bounds = array<i64: 1, 128>}, {transform_indices = @transform_5, window_bounds = array<i64: 16, 128>}]} {
    %c0_i32 = arith.constant 0 : i32
    %0 = arith.cmpi eq, %arg1, %c0_i32 : i32
    %1 = arith.extui %0 : i1 to i32
    %c0_i32_0 = arith.constant 0 : i32
    %2 = arith.cmpi ne, %1, %c0_i32_0 : i32
    scf.if %2 {
      %cst_18 = arith.constant 0.000000e+00 : f32
      %25 = vector.broadcast %cst_18 : f32 to vector<16x128xf32>
      %c0_19 = arith.constant 0 : index
      %c0_20 = arith.constant 0 : index
      %26 = vector.load %arg7[%c0_19, %c0_20] : memref<16x128xf32, #tpu.memory_space<vmem>>, vector<16x128xf32>
      tpu.vector_store %arg7[%c0_19, %c0_20], %25 {strides = array<i32>} : memref<16x128xf32, #tpu.memory_space<vmem>>, vector<16x128xf32>,
    } else {
    }
    %c0 = arith.constant 0 : index
    %c0_1 = arith.constant 0 : index
    %3 = vector.load %arg2[%c0, %c0_1] : memref<16x128xf32, #tpu.memory_space<vmem>>, vector<16x128xf32>
    %c0_2 = arith.constant 0 : index
    %c0_3 = arith.constant 0 : index
    %4 = vector.load %arg3[%c0_2, %c0_3] : memref<128x128xf32, #tpu.memory_space<vmem>>, vector<128x128xf32>
    %cst = arith.constant dense<0.000000e+00> : vector<16x128xf32>
    %5 = tpu.matmul %3, %4, %cst {dimension_numbers = #tpu.dot_dimension_numbers<[1], [0], [0], [1], [0, 0, 1, 1], [], []>} : vector<16x128xf32>, vector<128x128xf32>, vector<16x128xf32> -> vector<16x128xf32>
    %c0_4 = arith.constant 0 : index
    %c0_5 = arith.constant 0 : index
    %6 = vector.load %arg4[%c0_4, %c0_5] : memref<1x128xf32, #tpu.memory_space<vmem>>, vector<1x128xf32>
    %7 = vector.broadcast %6 : vector<1x128xf32> to vector<16x128xf32>
    %8 = arith.addf %5, %7 : vector<16x128xf32>
    %cst_6 = arith.constant 5.000000e-01 : f32
    %9 = vector.broadcast %cst_6 : f32 to vector<16x128xf32>
    %10 = arith.mulf %9, %8 : vector<16x128xf32>
    %cst_7 = arith.constant 0.707106769 : f32
    %11 = vector.broadcast %cst_7 : f32 to vector<16x128xf32>
    %12 = arith.mulf %8, %11 : vector<16x128xf32>
    %13 = math.erf %12 : vector<16x128xf32>
    %cst_8 = arith.constant 1.000000e+00 : f32
    %14 = vector.broadcast %cst_8 : f32 to vector<16x128xf32>
    %15 = arith.addf %14, %13 : vector<16x128xf32>
    %16 = arith.mulf %10, %15 : vector<16x128xf32>
    %c0_9 = arith.constant 0 : index
    %c0_10 = arith.constant 0 : index
    %17 = vector.load %arg7[%c0_9, %c0_10] : memref<16x128xf32, #tpu.memory_space<vmem>>, vector<16x128xf32>
    %c0_11 = arith.constant 0 : index
    %c0_12 = arith.constant 0 : index
    %18 = vector.load %arg5[%c0_11, %c0_12] : memref<128x128xf32, #tpu.memory_space<vmem>>, vector<128x128xf32>
    %cst_13 = arith.constant dense<0.000000e+00> : vector<16x128xf32>
    %19 = tpu.matmul %16, %18, %cst_13 {dimension_numbers = #tpu.dot_dimension_numbers<[1], [0], [0], [1], [0, 0, 1, 1], [], []>} : vector<16x128xf32>, vector<128x128xf32>, vector<16x128xf32> -> vector<16x128xf32>
    %20 = arith.addf %17, %19 : vector<16x128xf32>
    %c0_14 = arith.constant 0 : index
    %c0_15 = arith.constant 0 : index
    %21 = vector.load %arg7[%c0_14, %c0_15] : memref<16x128xf32, #tpu.memory_space<vmem>>, vector<16x128xf32>
    tpu.vector_store %arg7[%c0_14, %c0_15], %20 {strides = array<i32>} : memref<16x128xf32, #tpu.memory_space<vmem>>, vector<16x128xf32>,
    %c0_i32_16 = arith.constant 0 : i32
    %22 = arith.cmpi eq, %arg1, %c0_i32_16 : i32
    %23 = arith.extui %22 : i1 to i32
    %c0_i32_17 = arith.constant 0 : i32
    %24 = arith.cmpi ne, %23, %c0_i32_17 : i32
    scf.if %24 {
      %c0_18 = arith.constant 0 : index
      %c0_19 = arith.constant 0 : index
      %25 = vector.load %arg7[%c0_18, %c0_19] : memref<16x128xf32, #tpu.memory_space<vmem>>, vector<16x128xf32>
      %c0_20 = arith.constant 0 : index
      %c0_21 = arith.constant 0 : index
      %26 = vector.load %arg6[%c0_20, %c0_21] : memref<1x128xf32, #tpu.memory_space<vmem>>, vector<1x128xf32>
      %27 = vector.broadcast %26 : vector<1x128xf32> to vector<16x128xf32>
      %28 = arith.addf %25, %27 : vector<16x128xf32>
      %c0_22 = arith.constant 0 : index
      %c0_23 = arith.constant 0 : index
      %29 = vector.load %arg7[%c0_22, %c0_23] : memref<16x128xf32, #tpu.memory_space<vmem>>, vector<16x128xf32>
      tpu.vector_store %arg7[%c0_22, %c0_23], %28 {strides = array<i32>} : memref<16x128xf32, #tpu.memory_space<vmem>>, vector<16x128xf32>,
    } else {
    }
    return
  }
  func.func @transform_0(%arg0: i32, %arg1: i32) -> (i32, i32) {
    %c0_i32 = arith.constant 0 : i32
    %c0_i32_0 = arith.constant 0 : i32
    return %arg0, %c0_i32 : i32, i32
  }
  func.func @transform_1(%arg0: i32, %arg1: i32) -> (i32, i32) {
    %c0_i32 = arith.constant 0 : i32
    %c0_i32_0 = arith.constant 0 : i32
    return %c0_i32, %arg1 : i32, i32
  }
  func.func @transform_2(%arg0: i32, %arg1: i32) -> (i32, i32) {
    %c0_i32 = arith.constant 0 : i32
    %c0_i32_0 = arith.constant 0 : i32
    return %c0_i32, %arg1 : i32, i32
  }
  func.func @transform_3(%arg0: i32, %arg1: i32) -> (i32, i32) {
    %c0_i32 = arith.constant 0 : i32
    %c0_i32_0 = arith.constant 0 : i32
    return %arg1, %c0_i32 : i32, i32
  }
  func.func @transform_4(%arg0: i32, %arg1: i32) -> (i32, i32) {
    %c0_i32 = arith.constant 0 : i32
    %c0_i32_0 = arith.constant 0 : i32
    %c0_i32_1 = arith.constant 0 : i32
    return %c0_i32, %c0_i32_0 : i32, i32
  }
  func.func @transform_5(%arg0: i32, %arg1: i32) -> (i32, i32) {
    %c0_i32 = arith.constant 0 : i32
    %c0_i32_0 = arith.constant 0 : i32
    return %arg0, %c0_i32 : i32, i32
  }
}

</mosaic_0001>

<llo_original>
// kernel: tpu_custom_call.1
$region0: #{tpu_custom_call.1}
  #allocation0 [shape = 'u32[]', space=smem, size = 0x4, offset = 0x4, fixed_abs, tag = 'smem constant byte address 0x4 - core index']
  #allocation1 [shape = 'u32[144,128]{1,0:T(1,128)}', space=vmem, size = 0x12000, scoped, tag = 'internal scratch']
  %s0 = inlined_call_operand.hbm [shape: f32[16,128], index: 0, kind: input, shape index: {}]
  %s1 = inlined_call_operand.hbm [shape: f32[128,128], index: 1, kind: input, shape index: {}]
  %s2 = inlined_call_operand.vmem [shape: f32[1,128], index: 2, kind: input, shape index: {}]
  %s3 = inlined_call_operand.hbm [shape: f32[128,128], index: 3, kind: input, shape index: {}]
  %s4 = inlined_call_operand.vmem [shape: f32[1,128], index: 4, kind: input, shape index: {}]
  %s5 = inlined_call_operand.hbm [shape: f32[16,128], index: 5, kind: output, shape index: {}]
  %s6 = sld [smem:[#allocation0]]
  $region50: #{tpu_custom_call.1} parent=0
    _
  %s8 = ssub.s32 1, %s6
  %s9 = scalar_select 0, %s8, %s6
  $region1: #{tpu_custom_call.1} parent=0
    #allocation2 [shape = 'u8[8192]{0}', space=vmem, size = 0x2000, scoped, tag = 'input window, operand 0, single buffered']
    #allocation3 [shape = 's32[1]{0}', space=sflag, size = 0x4, scoped, tag = 'scoped memory for tpu_custom_call.1']
    #allocation4 [shape = 's32[1]{0}', space=sflag, size = 0x4, scoped, tag = 'scoped memory for tpu_custom_call.1']
    #allocation5 [shape = 'u8[65536]{0}', space=vmem, size = 0x10000, scoped, tag = 'input window, operand 1, single buffered']
    #allocation6 [shape = 's32[1]{0}', space=sflag, size = 0x4, scoped, tag = 'scoped memory for tpu_custom_call.1']
    #allocation7 [shape = 'u8[65536]{0}', space=vmem, size = 0x10000, scoped, tag = 'input window, operand 3, single buffered']
    #allocation8 [shape = 'u8[8192]{0}', space=vmem, size = 0x2000, scoped, tag = 'output window, operand 0, single buffered']
    %10 = vsyncpa [#allocation3], 0
    %11 = vsyncpa [#allocation6], 0
    %12 = vsyncpa [#allocation4], 0
    // Predicated region
    $region2: #{tpu_custom_call.1} parent=1 // pred_check
      _
    $region3: #{tpu_custom_call.1} parent=1 // pred_check_branch
      %14 = sbr.rel (0) target = $region5
    $region4: #{tpu_custom_call.1} parent=1 // pred_region
      %s16 = ssub.s32 256, 256
      %17 = vsyncadd [#allocation3], %s16
      %s18 = sshll.u32 [#allocation2], 4
      %s19 = int_to_ptr.vmem [resolvable:$true] %s18
      %24 = dma.hbm_to_vmem [thread:$0]  %s0, 256, %s19, [#allocation3], 128, 128, 8
    $region5: #{tpu_custom_call.1} parent=1 // pred_fallthru
      _
    // Predicated region
    $region6: #{tpu_custom_call.1} parent=1 // pred_check
      _
    $region7: #{tpu_custom_call.1} parent=1 // pred_check_branch
      %26 = sbr.rel (0) target = $region9
    $region8: #{tpu_custom_call.1} parent=1 // pred_region
      %s28 = ssub.s32 2048, 2048
      %29 = vsyncadd [#allocation6], %s28
      %s30 = sshll.u32 [#allocation5], 4
      %s31 = int_to_ptr.vmem [resolvable:$true] %s30
      %36 = dma.hbm_to_vmem [thread:$0]  %s1, 2048, %s31, [#allocation6], 128, 128, 8
    $region9: #{tpu_custom_call.1} parent=1 // pred_fallthru
      _
    // Predicated region
    $region10: #{tpu_custom_call.1} parent=1 // pred_check
      _
    $region11: #{tpu_custom_call.1} parent=1 // pred_check_branch
      %38 = sbr.rel (0) target = $region13
    $region12: #{tpu_custom_call.1} parent=1 // pred_region
      _
    $region13: #{tpu_custom_call.1} parent=1 // pred_fallthru
      _
    // Predicated region
    $region14: #{tpu_custom_call.1} parent=1 // pred_check
      _
    $region15: #{tpu_custom_call.1} parent=1 // pred_check_branch
      %40 = sbr.rel (0) target = $region17
    $region16: #{tpu_custom_call.1} parent=1 // pred_region
      %s42 = ssub.s32 2048, 2048
      %43 = vsyncadd [#allocation6], %s42
      %s44 = sshll.u32 [#allocation7], 4
      %s45 = int_to_ptr.vmem [resolvable:$true] %s44
      %50 = dma.hbm_to_vmem [thread:$0]  %s3, 2048, %s45, [#allocation6], 128, 128, 8
    $region17: #{tpu_custom_call.1} parent=1 // pred_fallthru
      _
    // Predicated region
    $region18: #{tpu_custom_call.1} parent=1 // pred_check
      _
    $region19: #{tpu_custom_call.1} parent=1 // pred_check_branch
      %52 = sbr.rel (0) target = $region21
    $region20: #{tpu_custom_call.1} parent=1 // pred_region
      _
    $region21: #{tpu_custom_call.1} parent=1 // pred_fallthru
      _
    // Predicated region
    $region22: #{tpu_custom_call.1} parent=1 // pred_check
      _
    $region23: #{tpu_custom_call.1} parent=1 // pred_check_branch
      %54 = sbr.rel (0) target = $region25
    $region24: #{tpu_custom_call.1} parent=1 // pred_region
      %55 = dma.done [#allocation3], 256
    $region25: #{tpu_custom_call.1} parent=1 // pred_fallthru
      _
    // Predicated region
    $region26: #{tpu_custom_call.1} parent=1 // pred_check
      _
    $region27: #{tpu_custom_call.1} parent=1 // pred_check_branch
      %57 = sbr.rel (0) target = $region29
    $region28: #{tpu_custom_call.1} parent=1 // pred_region
      %58 = dma.done [#allocation6], 2048
    $region29: #{tpu_custom_call.1} parent=1 // pred_fallthru
      _
    // Predicated region
    $region30: #{tpu_custom_call.1} parent=1 // pred_check
      _
    $region31: #{tpu_custom_call.1} parent=1 // pred_check_branch
      %60 = sbr.rel (0) target = $region33
    $region32: #{tpu_custom_call.1} parent=1 // pred_region
      %61 = dma.done [#allocation6], 2048
    $region33: #{tpu_custom_call.1} parent=1 // pred_fallthru
      _
    %p62 = scmp.eq.s32.totalorder 0, 0
    // Predicated region
    $region34: #{tpu_custom_call.1} parent=1 // pred_check
      %p63 = pneg %p62
    $region35: #{tpu_custom_call.1} parent=1 // pred_check_branch
      %65 = sbr.rel (%p63) target = $region37
    $region36: #{tpu_custom_call.1} parent=1 // pred_region
      %66 = vst [vmem:[#allocation8] sm:$0xff] 0.0
      %67 = vst [vmem:[#allocation8 + $0x8] sm:$0xff] 0.0
    $region37: #{tpu_custom_call.1} parent=1 // pred_fallthru
      _
    %v68 = vld [vmem:[#allocation2] sm:$0xff]
    %v69 = vld [vmem:[#allocation2 + $0x8] sm:$0xff]
    %v70 = vld [vmem:[#allocation5] sm:$0xff]
    %v71 = vld [vmem:[#allocation5 + $0x8] sm:$0xff]
    %v72 = vld [vmem:[#allocation5 + $0x10] sm:$0xff]
    %v73 = vld [vmem:[#allocation5 + $0x18] sm:$0xff]
    %v74 = vld [vmem:[#allocation5 + $0x20] sm:$0xff]
    %v75 = vld [vmem:[#allocation5 + $0x28] sm:$0xff]
    %v76 = vld [vmem:[#allocation5 + $0x30] sm:$0xff]
    %v77 = vld [vmem:[#allocation5 + $0x38] sm:$0xff]
    %v78 = vld [vmem:[#allocation5 + $0x40] sm:$0xff]
    %v79 = vld [vmem:[#allocation5 + $0x48] sm:$0xff]
    %v80 = vld [vmem:[#allocation5 + $0x50] sm:$0xff]
    %v81 = vld [vmem:[#allocation5 + $0x58] sm:$0xff]
    %v82 = vld [vmem:[#allocation5 + $0x60] sm:$0xff]
    %v83 = vld [vmem:[#allocation5 + $0x68] sm:$0xff]
    %v84 = vld [vmem:[#allocation5 + $0x70] sm:$0xff]
    %v85 = vld [vmem:[#allocation5 + $0x78] sm:$0xff]
    %v86 = vld [vmem:[%s2] sm:$0x1]
    %v88 = vlaneseq
    %v89 = vshrl.u32 %v88, 7
    %v90 = vsub.s32 0, %v89
    %v91 = vrot.slane %v86, %v90
    %93 = vmatprep.subr.mxu0 0.0
    %94 = vmatpush1.msra.mxu0 %v85
    %95 = vmatprep.subr.mxu0 0.0
    %96 = vmatpush1.msra.mxu0 %v84
    %97 = vmatprep.subr.mxu0 0.0
    %98 = vmatpush1.msra.mxu0 %v83
    %99 = vmatprep.subr.mxu0 0.0
    %100 = vmatpush1.msra.mxu0 %v82
    %101 = vmatprep.subr.mxu0 0.0
    %102 = vmatpush1.msra.mxu0 %v81
    %103 = vmatprep.subr.mxu0 0.0
    %104 = vmatpush1.msra.mxu0 %v80
    %105 = vmatprep.subr.mxu0 0.0
    %106 = vmatpush1.msra.mxu0 %v79
    %107 = vmatprep.subr.mxu0 0.0
    %108 = vmatpush1.msra.mxu0 %v78
    %109 = vmatprep.subr.mxu0 0.0
    %110 = vmatpush1.msra.mxu0 %v77
    %111 = vmatprep.subr.mxu0 0.0
    %112 = vmatpush1.msra.mxu0 %v76
    %113 = vmatprep.subr.mxu0 0.0
    %114 = vmatpush1.msra.mxu0 %v75
    %115 = vmatprep.subr.mxu0 0.0
    %116 = vmatpush1.msra.mxu0 %v74
    %117 = vmatprep.subr.mxu0 0.0
    %118 = vmatpush1.msra.mxu0 %v73
    %119 = vmatprep.subr.mxu0 0.0
    %120 = vmatpush1.msra.mxu0 %v72
    %121 = vmatprep.subr.mxu0 0.0
    %122 = vmatpush1.msra.mxu0 %v71
    %123 = vmatprep.subr.mxu0 0.0
    %124 = vmatpush1.msra.mxu0 %v70
    %125 = vmatprep.subr.mxu0 0.0
    %126 = vmatpush2.msra.mxu0 0.0
    %127 = vmatprep.subr.mxu0 0.0
    %128 = vmatpush2.msra.mxu0 0.0
    %129 = vmatprep.subr.mxu0 0.0
    %130 = vmatpush2.msra.mxu0 0.0
    %131 = vmatprep.subr.mxu0 0.0
    %132 = vmatpush2.msra.mxu0 0.0
    %133 = vmatprep.subr.mxu0 0.0
    %134 = vmatpush2.msra.mxu0 0.0
    %135 = vmatprep.subr.mxu0 0.0
    %136 = vmatpush2.msra.mxu0 0.0
    %137 = vmatprep.subr.mxu0 0.0
    %138 = vmatpush2.msra.mxu0 0.0
    %139 = vmatprep.subr.mxu0 0.0
    %140 = vmatpush2.msra.mxu0 0.0
    %141 = vmatprep.subr.mxu0 0.0
    %142 = vmatpush2.msra.mxu0 0.0
    %143 = vmatprep.subr.mxu0 0.0
    %144 = vmatpush2.msra.mxu0 0.0
    %145 = vmatprep.subr.mxu0 0.0
    %146 = vmatpush2.msra.mxu0 0.0
    %147 = vmatprep.subr.mxu0 0.0
    %148 = vmatpush2.msra.mxu0 0.0
    %149 = vmatprep.subr.mxu0 0.0
    %150 = vmatpush2.msra.mxu0 0.0
    %151 = vmatprep.subr.mxu0 0.0
    %152 = vmatpush2.msra.mxu0 0.0
    %153 = vmatprep.subr.mxu0 0.0
    %154 = vmatpush2.msra.mxu0 0.0
    %155 = vmatprep.subr.mxu0 0.0
    %156 = vmatpush2.msra.mxu0 0.0
    %157 = vmatprep.mubr.f32.mxu0 0.0
    %158 = vmatmul.mubr.f32.gmra.mxu0 %v68
    %v159 = vpop.f32.mrf.mxu0
    %v160 = vadd.f32 %v91, %v159
    %v161 = vpop.f32.mrf.mxu0
    %162 = vmatprep.mubr.f32.mxu0 0.0
    %163 = vmatmul.mubr.f32.gmra.mxu0 %v69
    %v164 = vpop.f32.mrf.mxu0
    %v165 = vadd.f32 %v91, %v164
    %v166 = vpop.f32.mrf.mxu0
    %167 = vdwg.mxu0
    %v168 = vmul.f32 %v160, 0.5
    %v169 = vmul.f32 %v165, 0.5
    %v170 = vmul.f32 %v160, 0.70710677
    %v171 = vmul.f32 %v165, 0.70710677
    %v172 = verf.f32.pop %v170
    %v173 = verf.f32.pop %v171
    %v174 = vadd.f32 %v172, 1.0
    %v175 = vadd.f32 %v173, 1.0
    %v176 = vmul.f32 %v168, %v174
    %v177 = vmul.f32 %v169, %v175
    %v178 = vld [vmem:[#allocation8] sm:$0xff]
    %v179 = vld [vmem:[#allocation8 + $0x8] sm:$0xff]
    %v180 = vld [vmem:[#allocation7] sm:$0xff]
    %v181 = vld [vmem:[#allocation7 + $0x8] sm:$0xff]
    %v182 = vld [vmem:[#allocation7 + $0x10] sm:$0xff]
    %v183 = vld [vmem:[#allocation7 + $0x18] sm:$0xff]
    %v184 = vld [vmem:[#allocation7 + $0x20] sm:$0xff]
    %v185 = vld [vmem:[#allocation7 + $0x28] sm:$0xff]
    %v186 = vld [vmem:[#allocation7 + $0x30] sm:$0xff]
    %v187 = vld [vmem:[#allocation7 + $0x38] sm:$0xff]
    %v188 = vld [vmem:[#allocation7 + $0x40] sm:$0xff]
    %v189 = vld [vmem:[#allocation7 + $0x48] sm:$0xff]
    %v190 = vld [vmem:[#allocation7 + $0x50] sm:$0xff]
    %v191 = vld [vmem:[#allocation7 + $0x58] sm:$0xff]
    %v192 = vld [vmem:[#allocation7 + $0x60] sm:$0xff]
    %v193 = vld [vmem:[#allocation7 + $0x68] sm:$0xff]
    %v194 = vld [vmem:[#allocation7 + $0x70] sm:$0xff]
    %v195 = vld [vmem:[#allocation7 + $0x78] sm:$0xff]
    %196 = vmatprep.subr.mxu0 0.0
    %197 = vmatpush1.msra.mxu0 %v195
    %198 = vmatprep.subr.mxu0 0.0
    %199 = vmatpush1.msra.mxu0 %v194
    %200 = vmatprep.subr.mxu0 0.0
    %201 = vmatpush1.msra.mxu0 %v193
    %202 = vmatprep.subr.mxu0 0.0
    %203 = vmatpush1.msra.mxu0 %v192
    %204 = vmatprep.subr.mxu0 0.0
    %205 = vmatpush1.msra.mxu0 %v191
    %206 = vmatprep.subr.mxu0 0.0
    %207 = vmatpush1.msra.mxu0 %v190
    %208 = vmatprep.subr.mxu0 0.0
    %209 = vmatpush1.msra.mxu0 %v189
    %210 = vmatprep.subr.mxu0 0.0
    %211 = vmatpush1.msra.mxu0 %v188
    %212 = vmatprep.subr.mxu0 0.0
    %213 = vmatpush1.msra.mxu0 %v187
    %214 = vmatprep.subr.mxu0 0.0
    %215 = vmatpush1.msra.mxu0 %v186
    %216 = vmatprep.subr.mxu0 0.0
    %217 = vmatpush1.msra.mxu0 %v185
    %218 = vmatprep.subr.mxu0 0.0
    %219 = vmatpush1.msra.mxu0 %v184
    %220 = vmatprep.subr.mxu0 0.0
    %221 = vmatpush1.msra.mxu0 %v183
    %222 = vmatprep.subr.mxu0 0.0
    %223 = vmatpush1.msra.mxu0 %v182
    %224 = vmatprep.subr.mxu0 0.0
    %225 = vmatpush1.msra.mxu0 %v181
    %226 = vmatprep.subr.mxu0 0.0
    %227 = vmatpush1.msra.mxu0 %v180
    %228 = vmatprep.subr.mxu0 0.0
    %229 = vmatpush2.msra.mxu0 0.0
    %230 = vmatprep.subr.mxu0 0.0
    %231 = vmatpush2.msra.mxu0 0.0
    %232 = vmatprep.subr.mxu0 0.0
    %233 = vmatpush2.msra.mxu0 0.0
    %234 = vmatprep.subr.mxu0 0.0
    %235 = vmatpush2.msra.mxu0 0.0
    %236 = vmatprep.subr.mxu0 0.0
    %237 = vmatpush2.msra.mxu0 0.0
    %238 = vmatprep.subr.mxu0 0.0
    %239 = vmatpush2.msra.mxu0 0.0
    %240 = vmatprep.subr.mxu0 0.0
    %241 = vmatpush2.msra.mxu0 0.0
    %242 = vmatprep.subr.mxu0 0.0
    %243 = vmatpush2.msra.mxu0 0.0
    %244 = vmatprep.subr.mxu0 0.0
    %245 = vmatpush2.msra.mxu0 0.0
    %246 = vmatprep.subr.mxu0 0.0
    %247 = vmatpush2.msra.mxu0 0.0
    %248 = vmatprep.subr.mxu0 0.0
    %249 = vmatpush2.msra.mxu0 0.0
    %250 = vmatprep.subr.mxu0 0.0
    %251 = vmatpush2.msra.mxu0 0.0
    %252 = vmatprep.subr.mxu0 0.0
    %253 = vmatpush2.msra.mxu0 0.0
    %254 = vmatprep.subr.mxu0 0.0
    %255 = vmatpush2.msra.mxu0 0.0
    %256 = vmatprep.subr.mxu0 0.0
    %257 = vmatpush2.msra.mxu0 0.0
    %258 = vmatprep.subr.mxu0 0.0
    %259 = vmatpush2.msra.mxu0 0.0
    %260 = vmatprep.mubr.f32.mxu0 0.0
    %261 = vmatmul.mubr.f32.gmra.mxu0 %v176
    %v262 = vpop.f32.mrf.mxu0
    %v263 = vadd.f32 0.0, %v262
    %v264 = vpop.f32.mrf.mxu0
    %265 = vmatprep.mubr.f32.mxu0 0.0
    %266 = vmatmul.mubr.f32.gmra.mxu0 %v177
    %v267 = vpop.f32.mrf.mxu0
    %v268 = vadd.f32 0.0, %v267
    %v269 = vpop.f32.mrf.mxu0
    %270 = vdwg.mxu0
    %v271 = vadd.f32 %v178, %v263
    %v272 = vadd.f32 %v179, %v268
    %273 = vst [vmem:[#allocation8] sm:$0xff] %v271
    %274 = vst [vmem:[#allocation8 + $0x8] sm:$0xff] %v272
    // Predicated region
    $region38: #{tpu_custom_call.1} parent=1 // pred_check
      %p275 = pneg %p62
    $region39: #{tpu_custom_call.1} parent=1 // pred_check_branch
      %277 = sbr.rel (%p275) target = $region41
    $region40: #{tpu_custom_call.1} parent=1 // pred_region
      %v278 = vld [vmem:[#allocation8] sm:$0xff]
      %v279 = vld [vmem:[#allocation8 + $0x8] sm:$0xff]
      %v280 = vld [vmem:[%s4] sm:$0x1]
      %v282 = vlaneseq
      %v283 = vshrl.u32 %v282, 7
      %v284 = vsub.s32 0, %v283
      %v285 = vrot.slane %v280, %v284
      %v287 = vadd.f32 %v278, %v285
      %v288 = vadd.f32 %v279, %v285
      %289 = vst [vmem:[#allocation8] sm:$0xff] %v287
      %290 = vst [vmem:[#allocation8 + $0x8] sm:$0xff] %v288
    $region41: #{tpu_custom_call.1} parent=1 // pred_fallthru
      _
    // Predicated region
    $region42: #{tpu_custom_call.1} parent=1 // pred_check
      _
    $region43: #{tpu_custom_call.1} parent=1 // pred_check_branch
      %292 = sbr.rel (0) target = $region45
    $region44: #{tpu_custom_call.1} parent=1 // pred_region
      %s294 = ssub.s32 256, 256
      %295 = vsyncadd [#allocation4], %s294
      %s296 = sshll.u32 [#allocation8], 4
      %s297 = int_to_ptr.vmem [resolvable:$true] %s296
      %302 = dma.vmem_to_hbm [thread:$0]  %s297, 256, %s5, [#allocation4], 128, 128, 8
    $region45: #{tpu_custom_call.1} parent=1 // pred_fallthru
      _
    // Predicated region
    $region46: #{tpu_custom_call.1} parent=1 // pred_check
      _
    $region47: #{tpu_custom_call.1} parent=1 // pred_check_branch
      %304 = sbr.rel (0) target = $region49
    $region48: #{tpu_custom_call.1} parent=1 // pred_region
      %305 = dma.done [#allocation4], 256
    $region49: #{tpu_custom_call.1} parent=1 // pred_fallthru
      _
    %306 = vsyncpa [#allocation3], 1
    %307 = vsyncpa [#allocation6], 1
    %308 = vsyncpa [#allocation4], 1

</llo_original>
